<compile_context>
chip_gen: v6e
topology: v6e:2x2x1
jax: 0.10.0
libtpu: 0.0.40
codegen_flags: <defaults>
</compile_context>

<pallas_src>
import functools

import jax
import jax.numpy as jnp
from jax.experimental import pallas as pl
from jax.experimental.pallas import tpu as pltpu

NUM_CLASSES = 11
PAD_CLASSES = 128   # last layer padded to one full lane group
TB_MAX = 512        # max batch-tile rows (multiple of 256 keeps v6e/v7x MXU full)


def _round_up(x, m):
    return ((x + m - 1) // m) * m


def _discriminator_kernel(
    x_ref, w1_ref, b1_ref, w2_ref, b2_ref, w3_ref, b3_ref,
    logit_ref, prob_ref,
):
    x = x_ref[...]  # (TB, 784) bf16

    # fc1 + leaky_relu(0.2)
    h = jnp.dot(x, w1_ref[...], preferred_element_type=jnp.float32) + b1_ref[...]
    h = jnp.maximum(h, 0.2 * h)

    # fc2 + leaky_relu(0.2)
    h = jnp.dot(h.astype(jnp.bfloat16), w2_ref[...],
                preferred_element_type=jnp.float32) + b2_ref[...]
    h = jnp.maximum(h, 0.2 * h)

    # fc3 (padded to PAD_CLASSES lanes)
    logit = jnp.dot(h.astype(jnp.bfloat16), w3_ref[...],
                    preferred_element_type=jnp.float32) + b3_ref[...]
    logit_ref[...] = logit

    # softmax over the valid NUM_CLASSES columns only (padded cols masked out)
    col = jax.lax.broadcasted_iota(jnp.int32, logit.shape, dimension=1)
    valid = col < NUM_CLASSES
    masked = jnp.where(valid, logit, -jnp.inf)
    m = jnp.max(masked, axis=-1, keepdims=True)
    e = jnp.where(valid, jnp.exp(masked - m), 0.0)
    denom = jnp.sum(e, axis=-1, keepdims=True)
    prob_ref[...] = e * pl.reciprocal(denom, approx=True)


def prepare_params(params):
    """One-time param prep: pad fc3 to 128 lanes, cast weights to bf16."""
    w1, b1, w2, b2, w3, b3 = params
    w3p = jnp.zeros((w3.shape[0], PAD_CLASSES), jnp.float32).at[:, :NUM_CLASSES].set(w3)
    b3p = jnp.zeros((1, PAD_CLASSES), jnp.float32).at[0, :NUM_CLASSES].set(b3)
    return (
        w1.astype(jnp.bfloat16), b1.reshape(1, -1).astype(jnp.float32),
        w2.astype(jnp.bfloat16), b2.reshape(1, -1).astype(jnp.float32),
        w3p.astype(jnp.bfloat16), b3p,
    )


def mnist_discriminator(x, prep_params):
    """x: any shape with trailing elements multiple of 784 (e.g. [B,1,28,28]).

    Returns (logit [B, 11], prob [B, 11]) matching the PyTorch module.
    """
    w1, b1, w2, b2, w3p, b3p = prep_params
    x2d = x.reshape(-1, 784)
    batch = x2d.shape[0]

    # Batch tile: multiple of 8, capped at TB_MAX; pad batch to a tile multiple.
    tb = min(TB_MAX, _round_up(batch, 8))
    padded = _round_up(batch, tb)
    if padded != batch:
        x2d = jnp.pad(x2d, ((0, padded - batch), (0, 0)))
    xb = x2d.astype(jnp.bfloat16)

    row_spec = lambda shape: pl.BlockSpec(shape, lambda i: (i, 0))      # batch-tiled
    const_spec = lambda shape: pl.BlockSpec(shape, lambda i: (0, 0))    # VMEM-resident

    logit_pad, prob_pad = pl.pallas_call(
        _discriminator_kernel,
        out_shape=(
            jax.ShapeDtypeStruct((padded, PAD_CLASSES), jnp.float32),
            jax.ShapeDtypeStruct((padded, PAD_CLASSES), jnp.float32),
        ),
        grid_spec=pltpu.PrefetchScalarGridSpec(
            num_scalar_prefetch=0,
            grid=(padded // tb,),
            in_specs=[
                row_spec((tb, 784)),
                const_spec(w1.shape), const_spec(b1.shape),
                const_spec(w2.shape), const_spec(b2.shape),
                const_spec(w3p.shape), const_spec(b3p.shape),
            ],
            out_specs=[
                row_spec((tb, PAD_CLASSES)),
                row_spec((tb, PAD_CLASSES)),
            ],
        ),
        compiler_params=pltpu.CompilerParams(
            dimension_semantics=("parallel",),   # megacore-shard batch axis on v7x
            vmem_limit_bytes=32 << 20,           # headroom for double buffers; fits v7x 64 MiB
        ),
    )(xb, w1, b1, w2, b2, w3p, b3p)

    return logit_pad[:batch, :NUM_CLASSES], prob_pad[:batch, :NUM_CLASSES]


def init_params(key):
    """Deterministic init mirroring torch.nn.Linear default (U[-1/sqrt(in), 1/sqrt(in)])."""
    dims = [784, 256, 256, 11]
    params = []
    for din, dout in zip(dims[:-1], dims[1:]):
        kw, kb, key = jax.random.split(key, 3)
        bound = 1.0 / (din ** 0.5)
        w = jax.random.uniform(kw, (din, dout), jnp.float32, -bound, bound)
        b = jax.random.uniform(kb, (dout,), jnp.float32, -bound, bound)
        params += [w, b]
    return tuple(params)


def _reference_f32(x, params):
    w1, b1, w2, b2, w3, b3 = params
    h = x.reshape(-1, 784).astype(jnp.float32)
    h = h @ w1 + b1
    h = jnp.where(h > 0, h, 0.2 * h)
    h = h @ w2 + b2
    h = jnp.where(h > 0, h, 0.2 * h)
    logit = h @ w3 + b3
    prob = jax.nn.softmax(logit, axis=-1)
    return logit, prob


if __name__ == "__main__":
    key = jax.random.PRNGKey(0)
    kx, kp = jax.random.split(key)
    # MNIST-like input: NCHW images (batch=4, 1, 28, 28) -> flattened to 784.
    x = jax.random.normal(kx, (4, 1, 28, 28), jnp.float32)
    params = init_params(kp)
    prep = prepare_params(params)   # padding/casting hoisted out of the hot path

    fwd = jax.jit(functools.partial(mnist_discriminator, prep_params=prep))
    logit, prob = fwd(x)
    jax.block_until_ready((logit, prob))

    ref_logit, ref_prob = _reference_f32(x, params)
    assert logit.shape == (4, NUM_CLASSES) and prob.shape == (4, NUM_CLASSES)
    # bf16 matmul inputs with f32 accumulation: loosened vs exact-f32 reference.
    assert jnp.allclose(logit, ref_logit, atol=3e-2, rtol=3e-2), \
        float(jnp.max(jnp.abs(logit - ref_logit)))
    assert jnp.allclose(prob, ref_prob, atol=1e-2, rtol=3e-2), \
        float(jnp.max(jnp.abs(prob - ref_prob)))
    assert jnp.allclose(jnp.sum(prob, axis=-1), 1.0, atol=5e-3)

    print("KERNEL_OK")
</pallas_src>

<mosaic_0001>
module attributes {stable_mosaic.version = 11 : i64} {
  func.func @_discriminator_kernel(%arg0: i32, %arg1: memref<8x784xbf16, #tpu.memory_space<vmem>>, %arg2: memref<784x256xbf16, #tpu.memory_space<vmem>>, %arg3: memref<1x256xf32, #tpu.memory_space<vmem>>, %arg4: memref<256x256xbf16, #tpu.memory_space<vmem>>, %arg5: memref<1x256xf32, #tpu.memory_space<vmem>>, %arg6: memref<256x128xbf16, #tpu.memory_space<vmem>>, %arg7: memref<1x128xf32, #tpu.memory_space<vmem>>, %arg8: memref<8x128xf32, #tpu.memory_space<vmem>>, %arg9: memref<8x128xf32, #tpu.memory_space<vmem>>) attributes {dimension_semantics = [#tpu.dimension_semantics<parallel>], iteration_bounds = array<i64: 1>, scalar_prefetch = 0 : i64, scratch_operands = 0 : i64, tpu.core_type = #tpu.core_type<tc>, window_params = [{transform_indices = @transform_0, window_bounds = array<i64: 8, 784>}, {pipeline_mode = #tpu.pipeline_mode<synchronous>, transform_indices = @transform_1, window_bounds = array<i64: 784, 256>}, {pipeline_mode = #tpu.pipeline_mode<synchronous>, transform_indices = @transform_2, window_bounds = array<i64: 1, 256>}, {pipeline_mode = #tpu.pipeline_mode<synchronous>, transform_indices = @transform_3, window_bounds = array<i64: 256, 256>}, {pipeline_mode = #tpu.pipeline_mode<synchronous>, transform_indices = @transform_4, window_bounds = array<i64: 1, 256>}, {pipeline_mode = #tpu.pipeline_mode<synchronous>, transform_indices = @transform_5, window_bounds = array<i64: 256, 128>}, {pipeline_mode = #tpu.pipeline_mode<synchronous>, transform_indices = @transform_6, window_bounds = array<i64: 1, 128>}, {transform_indices = @transform_7, window_bounds = array<i64: 8, 128>}, {transform_indices = @transform_8, window_bounds = array<i64: 8, 128>}]} {
    %c0 = arith.constant 0 : index
    %c0_0 = arith.constant 0 : index
    %0 = vector.load %arg1[%c0, %c0_0] : memref<8x784xbf16, #tpu.memory_space<vmem>>, vector<8x784xbf16>
    %c0_1 = arith.constant 0 : index
    %c0_2 = arith.constant 0 : index
    %1 = vector.load %arg2[%c0_1, %c0_2] : memref<784x256xbf16, #tpu.memory_space<vmem>>, vector<784x256xbf16>
    %cst = arith.constant dense<0.000000e+00> : vector<8x256xf32>
    %2 = tpu.matmul %0, %1, %cst {dimension_numbers = #tpu.dot_dimension_numbers<[1], [0], [0], [1], [0, 0, 1, 1], [], []>} : vector<8x784xbf16>, vector<784x256xbf16>, vector<8x256xf32> -> vector<8x256xf32>
    %c0_3 = arith.constant 0 : index
    %c0_4 = arith.constant 0 : index
    %3 = vector.load %arg3[%c0_3, %c0_4] : memref<1x256xf32, #tpu.memory_space<vmem>>, vector<1x256xf32>
    %4 = vector.broadcast %3 : vector<1x256xf32> to vector<8x256xf32>
    %5 = arith.addf %2, %4 : vector<8x256xf32>
    %cst_5 = arith.constant 2.000000e-01 : f32
    %6 = vector.broadcast %cst_5 : f32 to vector<8x256xf32>
    %7 = arith.mulf %6, %5 : vector<8x256xf32>
    %8 = arith.maximumf %5, %7 : vector<8x256xf32>
    %9 = arith.truncf %8 : vector<8x256xf32> to vector<8x256xbf16>
    %c0_6 = arith.constant 0 : index
    %c0_7 = arith.constant 0 : index
    %10 = vector.load %arg4[%c0_6, %c0_7] : memref<256x256xbf16, #tpu.memory_space<vmem>>, vector<256x256xbf16>
    %cst_8 = arith.constant dense<0.000000e+00> : vector<8x256xf32>
    %11 = tpu.matmul %9, %10, %cst_8 {dimension_numbers = #tpu.dot_dimension_numbers<[1], [0], [0], [1], [0, 0, 1, 1], [], []>} : vector<8x256xbf16>, vector<256x256xbf16>, vector<8x256xf32> -> vector<8x256xf32>
    %c0_9 = arith.constant 0 : index
    %c0_10 = arith.constant 0 : index
    %12 = vector.load %arg5[%c0_9, %c0_10] : memref<1x256xf32, #tpu.memory_space<vmem>>, vector<1x256xf32>
    %13 = vector.broadcast %12 : vector<1x256xf32> to vector<8x256xf32>
    %14 = arith.addf %11, %13 : vector<8x256xf32>
    %cst_11 = arith.constant 2.000000e-01 : f32
    %15 = vector.broadcast %cst_11 : f32 to vector<8x256xf32>
    %16 = arith.mulf %15, %14 : vector<8x256xf32>
    %17 = arith.maximumf %14, %16 : vector<8x256xf32>
    %18 = arith.truncf %17 : vector<8x256xf32> to vector<8x256xbf16>
    %c0_12 = arith.constant 0 : index
    %c0_13 = arith.constant 0 : index
    %19 = vector.load %arg6[%c0_12, %c0_13] : memref<256x128xbf16, #tpu.memory_space<vmem>>, vector<256x128xbf16>
    %cst_14 = arith.constant dense<0.000000e+00> : vector<8x128xf32>
    %20 = tpu.matmul %18, %19, %cst_14 {dimension_numbers = #tpu.dot_dimension_numbers<[1], [0], [0], [1], [0, 0, 1, 1], [], []>} : vector<8x256xbf16>, vector<256x128xbf16>, vector<8x128xf32> -> vector<8x128xf32>
    %c0_15 = arith.constant 0 : index
    %c0_16 = arith.constant 0 : index
    %21 = vector.load %arg7[%c0_15, %c0_16] : memref<1x128xf32, #tpu.memory_space<vmem>>, vector<1x128xf32>
    %22 = vector.broadcast %21 : vector<1x128xf32> to vector<8x128xf32>
    %23 = arith.addf %20, %22 : vector<8x128xf32>
    %c0_17 = arith.constant 0 : index
    %c0_18 = arith.constant 0 : index
    %24 = vector.load %arg8[%c0_17, %c0_18] : memref<8x128xf32, #tpu.memory_space<vmem>>, vector<8x128xf32>
    tpu.vector_store %arg8[%c0_17, %c0_18], %23 {strides = array<i32>} : memref<8x128xf32, #tpu.memory_space<vmem>>, vector<8x128xf32>,
    %25 = tpu.iota {dimensions = array<i32: 1>} : vector<8x128xi32>
    %c11_i32 = arith.constant 11 : i32
    %26 = vector.broadcast %c11_i32 : i32 to vector<8x128xi32>
    %27 = arith.cmpi slt, %25, %26 : vector<8x128xi32>
    %cst_19 = arith.constant 0xFF800000 : f32
    %28 = vector.broadcast %cst_19 : f32 to vector<8x128xf32>
    %29 = arith.select %27, %23, %28 : vector<8x128xi1>, vector<8x128xf32>
    %cst_20 = arith.constant dense<0xFF800000> : vector<8xf32>
    %30 = vector.multi_reduction <maximumf>, %29, %cst_20 [1] : vector<8x128xf32> to vector<8xf32>
    %31 = vector.shape_cast %30 : vector<8xf32> to vector<8x1xf32>
    %32 = vector.broadcast %31 : vector<8x1xf32> to vector<8x128xf32>
    %33 = arith.subf %29, %32 : vector<8x128xf32>
    %34 = math.exp %33 : vector<8x128xf32>
    %cst_21 = arith.constant 0.000000e+00 : f32
    %35 = vector.broadcast %cst_21 : f32 to vector<8x128xf32>
    %36 = arith.select %27, %34, %35 : vector<8x128xi1>, vector<8x128xf32>
    %cst_22 = arith.constant dense<0.000000e+00> : vector<8xf32>
    %37 = vector.multi_reduction <add>, %36, %cst_22 [1] : vector<8x128xf32> to vector<8xf32>
    %38 = vector.shape_cast %37 : vector<8xf32> to vector<8x1xf32>
    %39 = tpu.reciprocal %38 {approx = true} : vector<8x1xf32> -> vector<8x1xf32>
    %40 = vector.broadcast %39 : vector<8x1xf32> to vector<8x128xf32>
    %41 = arith.mulf %36, %40 : vector<8x128xf32>
    %c0_23 = arith.constant 0 : index
    %c0_24 = arith.constant 0 : index
    %42 = vector.load %arg9[%c0_23, %c0_24] : memref<8x128xf32, #tpu.memory_space<vmem>>, vector<8x128xf32>
    tpu.vector_store %arg9[%c0_23, %c0_24], %41 {strides = array<i32>} : memref<8x128xf32, #tpu.memory_space<vmem>>, vector<8x128xf32>,
    return
  }
  func.func @transform_0(%arg0: i32) -> (i32, i32) {
    %c0_i32 = arith.constant 0 : i32
    %c0_i32_0 = arith.constant 0 : i32
    return %arg0, %c0_i32 : i32, i32
  }
  func.func @transform_1(%arg0: i32) -> (i32, i32) {
    %c0_i32 = arith.constant 0 : i32
    %c0_i32_0 = arith.constant 0 : i32
    %c0_i32_1 = arith.constant 0 : i32
    return %c0_i32, %c0_i32_0 : i32, i32
  }
  func.func @transform_2(%arg0: i32) -> (i32, i32) {
    %c0_i32 = arith.constant 0 : i32
    %c0_i32_0 = arith.constant 0 : i32
    %c0_i32_1 = arith.constant 0 : i32
    return %c0_i32, %c0_i32_0 : i32, i32
  }
  func.func @transform_3(%arg0: i32) -> (i32, i32) {
    %c0_i32 = arith.constant 0 : i32
    %c0_i32_0 = arith.constant 0 : i32
    %c0_i32_1 = arith.constant 0 : i32
    return %c0_i32, %c0_i32_0 : i32, i32
  }
  func.func @transform_4(%arg0: i32) -> (i32, i32) {
    %c0_i32 = arith.constant 0 : i32
    %c0_i32_0 = arith.constant 0 : i32
    %c0_i32_1 = arith.constant 0 : i32
    return %c0_i32, %c0_i32_0 : i32, i32
  }
  func.func @transform_5(%arg0: i32) -> (i32, i32) {
    %c0_i32 = arith.constant 0 : i32
    %c0_i32_0 = arith.constant 0 : i32
    %c0_i32_1 = arith.constant 0 : i32
    return %c0_i32, %c0_i32_0 : i32, i32
  }
  func.func @transform_6(%arg0: i32) -> (i32, i32) {
    %c0_i32 = arith.constant 0 : i32
    %c0_i32_0 = arith.constant 0 : i32
    %c0_i32_1 = arith.constant 0 : i32
    return %c0_i32, %c0_i32_0 : i32, i32
  }
  func.func @transform_7(%arg0: i32) -> (i32, i32) {
    %c0_i32 = arith.constant 0 : i32
    %c0_i32_0 = arith.constant 0 : i32
    return %arg0, %c0_i32 : i32, i32
  }
  func.func @transform_8(%arg0: i32) -> (i32, i32) {
    %c0_i32 = arith.constant 0 : i32
    %c0_i32_0 = arith.constant 0 : i32
    return %arg0, %c0_i32 : i32, i32
  }
}

</mosaic_0001>

<llo_original>
// kernel: mnist_discriminator.1
$region0: #{mnist_discriminator.1}
  #allocation0 [shape = 'u32[]', space=smem, size = 0x4, offset = 0x4, fixed_abs, tag = 'smem constant byte address 0x4 - core index']
  #allocation1 [shape = 'u32[144,128]{1,0:T(1,128)}', space=vmem, size = 0x12000, scoped, tag = 'internal scratch']
  %s0 = inlined_call_operand.vmem [shape: bf16[8,784], index: 0, kind: input, shape index: {}]
  %s1 = inlined_call_operand.hbm [shape: bf16[784,256], index: 1, kind: input, shape index: {}]
  %s2 = inlined_call_operand.vmem [shape: f32[1,256], index: 2, kind: input, shape index: {}]
  %s3 = inlined_call_operand.vmem [shape: bf16[256,256], index: 3, kind: input, shape index: {}]
  %s4 = inlined_call_operand.vmem [shape: f32[1,256], index: 4, kind: input, shape index: {}]
  %s5 = inlined_call_operand.hbm [shape: bf16[256,128], index: 5, kind: input, shape index: {}]
  %s6 = inlined_call_operand.vmem [shape: f32[1,128], index: 6, kind: input, shape index: {}]
  %s7 = inlined_call_operand.vmem [shape: f32[8,128], index: 7, kind: output, shape index: {0}]
  %s8 = inlined_call_operand.vmem [shape: f32[8,128], index: 8, kind: output, shape index: {1}]
  %9 = xla_tuple %s7, %s8
  %s10 = sld [smem:[#allocation0]]
  $region54: #{mnist_discriminator.1} parent=0
    _
  %s12 = ssub.s32 1, %s10
  %s13 = scalar_select 0, %s12, %s10
  $region1: #{mnist_discriminator.1} parent=0
    #allocation2 [shape = 'u8[401408]{0}', space=vmem, size = 0x62000, scoped, tag = 'input window, operand 1, single buffered']
    #allocation3 [shape = 's32[1]{0}', space=sflag, size = 0x4, scoped, tag = 'scoped memory for mnist_discriminator.1']
    #allocation4 [shape = 'u8[65536]{0}', space=vmem, size = 0x10000, scoped, tag = 'input window, operand 5, single buffered']
    #allocation5 [shape = 's32[1]{0}', space=sflag, size = 0x4, scoped, tag = 'scoped memory for mnist_discriminator.1']
    %14 = vsyncpa [#allocation3], 0
    %15 = vsyncpa [#allocation5], 0
    // Predicated region
    $region2: #{mnist_discriminator.1} parent=1 // pred_check
      _
    $region3: #{mnist_discriminator.1} parent=1 // pred_check_branch
      %17 = sbr.rel (0) target = $region5
    $region4: #{mnist_discriminator.1} parent=1 // pred_region
      _
    $region5: #{mnist_discriminator.1} parent=1 // pred_fallthru
      _
    // Predicated region
    $region6: #{mnist_discriminator.1} parent=1 // pred_check
      _
    $region7: #{mnist_discriminator.1} parent=1 // pred_check_branch
      %19 = sbr.rel (0) target = $region9
    $region8: #{mnist_discriminator.1} parent=1 // pred_region
      %s21 = ssub.s32 12544, 12544
      %22 = vsyncadd [#allocation3], %s21
      %s23 = sshll.u32 [#allocation2], 4
      %s24 = int_to_ptr.vmem [resolvable:$true] %s23
      %29 = dma.hbm_to_vmem [thread:$0]  %s1, 12544, %s24, [#allocation3], 128, 128, 8
    $region9: #{mnist_discriminator.1} parent=1 // pred_fallthru
      _
    // Predicated region
    $region10: #{mnist_discriminator.1} parent=1 // pred_check
      _
    $region11: #{mnist_discriminator.1} parent=1 // pred_check_branch
      %31 = sbr.rel (0) target = $region13
    $region12: #{mnist_discriminator.1} parent=1 // pred_region
      _
    $region13: #{mnist_discriminator.1} parent=1 // pred_fallthru
      _
    // Predicated region
    $region14: #{mnist_discriminator.1} parent=1 // pred_check
      _
    $region15: #{mnist_discriminator.1} parent=1 // pred_check_branch
      %33 = sbr.rel (0) target = $region17
    $region16: #{mnist_discriminator.1} parent=1 // pred_region
      _
    $region17: #{mnist_discriminator.1} parent=1 // pred_fallthru
      _
    // Predicated region
    $region18: #{mnist_discriminator.1} parent=1 // pred_check
      _
    $region19: #{mnist_discriminator.1} parent=1 // pred_check_branch
      %35 = sbr.rel (0) target = $region21
    $region20: #{mnist_discriminator.1} parent=1 // pred_region
      _
    $region21: #{mnist_discriminator.1} parent=1 // pred_fallthru
      _
    // Predicated region
    $region22: #{mnist_discriminator.1} parent=1 // pred_check
      _
    $region23: #{mnist_discriminator.1} parent=1 // pred_check_branch
      %37 = sbr.rel (0) target = $region25
    $region24: #{mnist_discriminator.1} parent=1 // pred_region
      %s39 = ssub.s32 2048, 2048
      %40 = vsyncadd [#allocation5], %s39
      %s41 = sshll.u32 [#allocation4], 4
      %s42 = int_to_ptr.vmem [resolvable:$true] %s41
      %47 = dma.hbm_to_vmem [thread:$0]  %s5, 2048, %s42, [#allocation5], 64, 64, 4
    $region25: #{mnist_discriminator.1} parent=1 // pred_fallthru
      _
    // Predicated region
    $region26: #{mnist_discriminator.1} parent=1 // pred_check
      _
    $region27: #{mnist_discriminator.1} parent=1 // pred_check_branch
      %49 = sbr.rel (0) target = $region29
    $region28: #{mnist_discriminator.1} parent=1 // pred_region
      _
    $region29: #{mnist_discriminator.1} parent=1 // pred_fallthru
      _
    // Predicated region
    $region30: #{mnist_discriminator.1} parent=1 // pred_check
      _
    $region31: #{mnist_discriminator.1} parent=1 // pred_check_branch
      %51 = sbr.rel (0) target = $region33
    $region32: #{mnist_discriminator.1} parent=1 // pred_region
      %52 = dma.done [#allocation3], 12544
    $region33: #{mnist_discriminator.1} parent=1 // pred_fallthru
      _
    // Predicated region
    $region34: #{mnist_discriminator.1} parent=1 // pred_check
      _
    $region35: #{mnist_discriminator.1} parent=1 // pred_check_branch
      %54 = sbr.rel (0) target = $region37
    $region36: #{mnist_discriminator.1} parent=1 // pred_region
      %55 = dma.done [#allocation5], 2048
    $region37: #{mnist_discriminator.1} parent=1 // pred_fallthru
      _
    %v57 = vld [vmem:[%s0] sm:$0xff]
    %v58 = vld [vmem:[%s0 + $0x8] sm:$0xff]
    %v59 = vld [vmem:[%s0 + $0x10] sm:$0xff]
    %v60 = vld [vmem:[%s0 + $0x18] sm:$0xf]
    %v61 = vld [vmem:[#allocation2] sm:$0xff]
    %v62 = vld [vmem:[#allocation2 + $0x8] sm:$0xff]
    %v63 = vld [vmem:[#allocation2 + $0x10] sm:$0xff]
    %v64 = vld [vmem:[#allocation2 + $0x18] sm:$0xff]
    %v65 = vld [vmem:[#allocation2 + $0x20] sm:$0xff]
    %v66 = vld [vmem:[#allocation2 + $0x28] sm:$0xff]
    %v67 = vld [vmem:[#allocation2 + $0x30] sm:$0xff]
    %v68 = vld [vmem:[#allocation2 + $0x38] sm:$0xff]
    %v69 = vld [vmem:[#allocation2 + $0x40] sm:$0xff]
    %v70 = vld [vmem:[#allocation2 + $0x48] sm:$0xff]
    %v71 = vld [vmem:[#allocation2 + $0x50] sm:$0xff]
    %v72 = vld [vmem:[#allocation2 + $0x58] sm:$0xff]
    %v73 = vld [vmem:[#allocation2 + $0x60] sm:$0xff]
    %v74 = vld [vmem:[#allocation2 + $0x68] sm:$0xff]
    %v75 = vld [vmem:[#allocation2 + $0x70] sm:$0xff]
    %v76 = vld [vmem:[#allocation2 + $0x78] sm:$0xff]
    %v77 = vld [vmem:[#allocation2 + $0x80] sm:$0xff]
    %v78 = vld [vmem:[#allocation2 + $0x88] sm:$0xff]
    %v79 = vld [vmem:[#allocation2 + $0x90] sm:$0xff]
    %v80 = vld [vmem:[#allocation2 + $0x98] sm:$0xff]
    %v81 = vld [vmem:[#allocation2 + $0xa0] sm:$0xff]
    %v82 = vld [vmem:[#allocation2 + $0xa8] sm:$0xff]
    %v83 = vld [vmem:[#allocation2 + $0xb0] sm:$0xff]
    %v84 = vld [vmem:[#allocation2 + $0xb8] sm:$0xff]
    %v85 = vld [vmem:[#allocation2 + $0xc0] sm:$0xff]
    %v86 = vld [vmem:[#allocation2 + $0xc8] sm:$0xff]
    %v87 = vld [vmem:[#allocation2 + $0xd0] sm:$0xff]
    %v88 = vld [vmem:[#allocation2 + $0xd8] sm:$0xff]
    %v89 = vld [vmem:[#allocation2 + $0xe0] sm:$0xff]
    %v90 = vld [vmem:[#allocation2 + $0xe8] sm:$0xff]
    %v91 = vld [vmem:[#allocation2 + $0xf0] sm:$0xff]
    %v92 = vld [vmem:[#allocation2 + $0xf8] sm:$0xff]
    %v93 = vld [vmem:[#allocation2 + $0x100] sm:$0xff]
    %v94 = vld [vmem:[#allocation2 + $0x108] sm:$0xff]
    %v95 = vld [vmem:[#allocation2 + $0x110] sm:$0xff]
    %v96 = vld [vmem:[#allocation2 + $0x118] sm:$0xff]
    %v97 = vld [vmem:[#allocation2 + $0x120] sm:$0xff]
    %v98 = vld [vmem:[#allocation2 + $0x128] sm:$0xff]
    %v99 = vld [vmem:[#allocation2 + $0x130] sm:$0xff]
    %v100 = vld [vmem:[#allocation2 + $0x138] sm:$0xff]
    %v101 = vld [vmem:[#allocation2 + $0x140] sm:$0xff]
    %v102 = vld [vmem:[#allocation2 + $0x148] sm:$0xff]
    %v103 = vld [vmem:[#allocation2 + $0x150] sm:$0xff]
    %v104 = vld [vmem:[#allocation2 + $0x158] sm:$0xff]
    %v105 = vld [vmem:[#allocation2 + $0x160] sm:$0xff]
    %v106 = vld [vmem:[#allocation2 + $0x168] sm:$0xff]
    %v107 = vld [vmem:[#allocation2 + $0x170] sm:$0xff]
    %v108 = vld [vmem:[#allocation2 + $0x178] sm:$0xff]
    %v109 = vld [vmem:[#allocation2 + $0x180] sm:$0xff]
    %v110 = vld [vmem:[#allocation2 + $0x188] sm:$0xff]
    %v111 = vld [vmem:[#allocation2 + $0x190] sm:$0xff]
    %v112 = vld [vmem:[#allocation2 + $0x198] sm:$0xff]
    %v113 = vld [vmem:[#allocation2 + $0x1a0] sm:$0xff]
    %v114 = vld [vmem:[#allocation2 + $0x1a8] sm:$0xff]
    %v115 = vld [vmem:[#allocation2 + $0x1b0] sm:$0xff]
    %v116 = vld [vmem:[#allocation2 + $0x1b8] sm:$0xff]
    %v117 = vld [vmem:[#allocation2 + $0x1c0] sm:$0xff]
    %v118 = vld [vmem:[#allocation2 + $0x1c8] sm:$0xff]
    %v119 = vld [vmem:[#allocation2 + $0x1d0] sm:$0xff]
    %v120 = vld [vmem:[#allocation2 + $0x1d8] sm:$0xff]
    %v121 = vld [vmem:[#allocation2 + $0x1e0] sm:$0xff]
    %v122 = vld [vmem:[#allocation2 + $0x1e8] sm:$0xff]
    %v123 = vld [vmem:[#allocation2 + $0x1f0] sm:$0xff]
    %v124 = vld [vmem:[#allocation2 + $0x1f8] sm:$0xff]
    %v125 = vld [vmem:[#allocation2 + $0x200] sm:$0xff]
    %v126 = vld [vmem:[#allocation2 + $0x208] sm:$0xff]
    %v127 = vld [vmem:[#allocation2 + $0x210] sm:$0xff]
    %v128 = vld [vmem:[#allocation2 + $0x218] sm:$0xff]
    %v129 = vld [vmem:[#allocation2 + $0x220] sm:$0xff]
    %v130 = vld [vmem:[#allocation2 + $0x228] sm:$0xff]
    %v131 = vld [vmem:[#allocation2 + $0x230] sm:$0xff]
    %v132 = vld [vmem:[#allocation2 + $0x238] sm:$0xff]
    %v133 = vld [vmem:[#allocation2 + $0x240] sm:$0xff]
    %v134 = vld [vmem:[#allocation2 + $0x248] sm:$0xff]
    %v135 = vld [vmem:[#allocation2 + $0x250] sm:$0xff]
    %v136 = vld [vmem:[#allocation2 + $0x258] sm:$0xff]
    %v137 = vld [vmem:[#allocation2 + $0x260] sm:$0xff]
    %v138 = vld [vmem:[#allocation2 + $0x268] sm:$0xff]
    %v139 = vld [vmem:[#allocation2 + $0x270] sm:$0xff]
    %v140 = vld [vmem:[#allocation2 + $0x278] sm:$0xff]
    %v141 = vld [vmem:[#allocation2 + $0x280] sm:$0xff]
    %v142 = vld [vmem:[#allocation2 + $0x288] sm:$0xff]
    %v143 = vld [vmem:[#allocation2 + $0x290] sm:$0xff]
    %v144 = vld [vmem:[#allocation2 + $0x298] sm:$0xff]
    %v145 = vld [vmem:[#allocation2 + $0x2a0] sm:$0xff]
    %v146 = vld [vmem:[#allocation2 + $0x2a8] sm:$0xff]
    %v147 = vld [vmem:[#allocation2 + $0x2b0] sm:$0xff]
    %v148 = vld [vmem:[#allocation2 + $0x2b8] sm:$0xff]
    %v149 = vld [vmem:[#allocation2 + $0x2c0] sm:$0xff]
    %v150 = vld [vmem:[#allocation2 + $0x2c8] sm:$0xff]
    %v151 = vld [vmem:[#allocation2 + $0x2d0] sm:$0xff]
    %v152 = vld [vmem:[#allocation2 + $0x2d8] sm:$0xff]
    %v153 = vld [vmem:[#allocation2 + $0x2e0] sm:$0xff]
    %v154 = vld [vmem:[#allocation2 + $0x2e8] sm:$0xff]
    %v155 = vld [vmem:[#allocation2 + $0x2f0] sm:$0xff]
    %v156 = vld [vmem:[#allocation2 + $0x2f8] sm:$0xff]
    %v157 = vld [vmem:[#allocation2 + $0x300] sm:$0xff]
    %v158 = vld [vmem:[#allocation2 + $0x308] sm:$0xff]
    %v159 = vld [vmem:[%s2] sm:$0x3]
    %v161 = vlaneseq
    %v162 = vshrl.u32 %v161, 7
    %v163 = vsub.s32 0, %v162
    %v164 = vrot.slane %v159, %v163
    %v165 = vlaneseq
    %v166 = vshrl.u32 %v165, 7
    %v167 = vsub.s32 1, %v166
    %v168 = vrot.slane %v159, %v167
    %v175 = vunpack.c.l.b16 %v57
    %v176 = vunpack.c.h.b16 %v57
    %v177 = vunpack.c.l.b16 %v58
    %v178 = vunpack.c.h.b16 %v58
    %v179 = vunpack.c.l.b16 %v59
    %v180 = vunpack.c.h.b16 %v59
    %v181 = vunpack.c.l.b16 %v60
    %v182 = vpack.c.b16 %v175, %v175
    %v183 = vpack.c.b16 %v176, %v176
    %v184 = vpack.c.b16 %v177, %v177
    %v185 = vpack.c.b16 %v178, %v178
    %v186 = vpack.c.b16 %v179, %v179
    %v187 = vpack.c.b16 %v180, %v180
    %v188 = vpack.c.b16 %v181, %v181
    %v293 = vunpack.c.l.b16 %v61
    %v294 = vunpack.c.h.b16 %v61
    %v295 = vunpack.c.l.b16 %v62
    %v296 = vunpack.c.h.b16 %v62
    %v297 = vunpack.c.l.b16 %v63
    %v298 = vunpack.c.h.b16 %v63
    %v299 = vunpack.c.l.b16 %v64
    %v300 = vunpack.c.h.b16 %v64
    %v301 = vunpack.c.l.b16 %v65
    %v302 = vunpack.c.h.b16 %v65
    %v303 = vunpack.c.l.b16 %v66
    %v304 = vunpack.c.h.b16 %v66
    %v305 = vunpack.c.l.b16 %v67
    %v306 = vunpack.c.h.b16 %v67
    %v307 = vunpack.c.l.b16 %v68
    %v308 = vunpack.c.h.b16 %v68
    %v309 = vunpack.c.l.b16 %v69
    %v310 = vunpack.c.h.b16 %v69
    %v311 = vunpack.c.l.b16 %v70
    %v312 = vunpack.c.h.b16 %v70
    %v313 = vunpack.c.l.b16 %v71
    %v314 = vunpack.c.h.b16 %v71
    %v315 = vunpack.c.l.b16 %v72
    %v316 = vunpack.c.h.b16 %v72
    %v317 = vunpack.c.l.b16 %v73
    %v318 = vunpack.c.h.b16 %v73
    %v319 = vunpack.c.l.b16 %v74
    %v320 = vunpack.c.h.b16 %v74
    %v321 = vunpack.c.l.b16 %v75
    %v322 = vunpack.c.h.b16 %v75
    %v323 = vunpack.c.l.b16 %v76
    %v324 = vunpack.c.h.b16 %v76
    %v325 = vunpack.c.l.b16 %v77
    %v326 = vunpack.c.h.b16 %v77
    %v327 = vunpack.c.l.b16 %v78
    %v328 = vunpack.c.h.b16 %v78
    %v329 = vunpack.c.l.b16 %v79
    %v330 = vunpack.c.h.b16 %v79
    %v331 = vunpack.c.l.b16 %v80
    %v332 = vunpack.c.h.b16 %v80
    %v333 = vunpack.c.l.b16 %v81
    %v334 = vunpack.c.h.b16 %v81
    %v335 = vunpack.c.l.b16 %v82
    %v336 = vunpack.c.h.b16 %v82
    %v337 = vunpack.c.l.b16 %v83
    %v338 = vunpack.c.h.b16 %v83
    %v339 = vunpack.c.l.b16 %v84
    %v340 = vunpack.c.h.b16 %v84
    %v341 = vunpack.c.l.b16 %v85
    %v342 = vunpack.c.h.b16 %v85
    %v343 = vunpack.c.l.b16 %v86
    %v344 = vunpack.c.h.b16 %v86
    %v345 = vunpack.c.l.b16 %v87
    %v346 = vunpack.c.h.b16 %v87
    %v347 = vunpack.c.l.b16 %v88
    %v348 = vunpack.c.h.b16 %v88
    %v349 = vunpack.c.l.b16 %v89
    %v350 = vunpack.c.h.b16 %v89
    %v351 = vunpack.c.l.b16 %v90
    %v352 = vunpack.c.h.b16 %v90
    %v353 = vunpack.c.l.b16 %v91
    %v354 = vunpack.c.h.b16 %v91
    %v355 = vunpack.c.l.b16 %v92
    %v356 = vunpack.c.h.b16 %v92
    %v357 = vunpack.c.l.b16 %v93
    %v358 = vunpack.c.h.b16 %v93
    %v359 = vunpack.c.l.b16 %v94
    %v360 = vunpack.c.h.b16 %v94
    %v361 = vunpack.c.l.b16 %v95
    %v362 = vunpack.c.h.b16 %v95
    %v363 = vunpack.c.l.b16 %v96
    %v364 = vunpack.c.h.b16 %v96
    %v365 = vunpack.c.l.b16 %v97
    %v366 = vunpack.c.h.b16 %v97
    %v367 = vunpack.c.l.b16 %v98
    %v368 = vunpack.c.h.b16 %v98
    %v369 = vunpack.c.l.b16 %v99
    %v370 = vunpack.c.h.b16 %v99
    %v371 = vunpack.c.l.b16 %v100
    %v372 = vunpack.c.h.b16 %v100
    %v373 = vunpack.c.l.b16 %v101
    %v374 = vunpack.c.h.b16 %v101
    %v375 = vunpack.c.l.b16 %v102
    %v376 = vunpack.c.h.b16 %v102
    %v377 = vunpack.c.l.b16 %v103
    %v378 = vunpack.c.h.b16 %v103
    %v379 = vunpack.c.l.b16 %v104
    %v380 = vunpack.c.h.b16 %v104
    %v381 = vunpack.c.l.b16 %v105
    %v382 = vunpack.c.h.b16 %v105
    %v383 = vunpack.c.l.b16 %v106
    %v384 = vunpack.c.h.b16 %v106
    %v385 = vunpack.c.l.b16 %v107
    %v386 = vunpack.c.h.b16 %v107
    %v387 = vunpack.c.l.b16 %v108
    %v388 = vunpack.c.h.b16 %v108
    %v389 = vunpack.c.l.b16 %v109
    %v390 = vunpack.c.h.b16 %v109
    %v391 = vunpack.c.l.b16 %v110
    %v392 = vunpack.c.h.b16 %v110
    %v393 = vunpack.c.l.b16 %v111
    %v394 = vunpack.c.h.b16 %v111
    %v395 = vunpack.c.l.b16 %v112
    %v396 = vunpack.c.h.b16 %v112
    %v397 = vunpack.c.l.b16 %v113
    %v398 = vunpack.c.h.b16 %v113
    %v399 = vunpack.c.l.b16 %v114
    %v400 = vunpack.c.h.b16 %v114
    %v401 = vunpack.c.l.b16 %v115
    %v402 = vunpack.c.h.b16 %v115
    %v403 = vunpack.c.l.b16 %v116
    %v404 = vunpack.c.h.b16 %v116
    %v405 = vunpack.c.l.b16 %v117
    %v406 = vunpack.c.h.b16 %v117
    %v407 = vunpack.c.l.b16 %v118
    %v408 = vunpack.c.h.b16 %v118
    %v409 = vunpack.c.l.b16 %v119
    %v410 = vunpack.c.h.b16 %v119
    %v411 = vunpack.c.l.b16 %v120
    %v412 = vunpack.c.h.b16 %v120
    %v413 = vunpack.c.l.b16 %v121
    %v414 = vunpack.c.h.b16 %v121
    %v415 = vunpack.c.l.b16 %v122
    %v416 = vunpack.c.h.b16 %v122
    %v417 = vunpack.c.l.b16 %v123
    %v418 = vunpack.c.h.b16 %v123
    %v419 = vunpack.c.l.b16 %v124
    %v420 = vunpack.c.h.b16 %v124
    %v421 = vunpack.c.l.b16 %v125
    %v422 = vunpack.c.h.b16 %v125
    %v423 = vunpack.c.l.b16 %v126
    %v424 = vunpack.c.h.b16 %v126
    %v425 = vunpack.c.l.b16 %v127
    %v426 = vunpack.c.h.b16 %v127
    %v427 = vunpack.c.l.b16 %v128
    %v428 = vunpack.c.h.b16 %v128
    %v429 = vunpack.c.l.b16 %v129
    %v430 = vunpack.c.h.b16 %v129
    %v431 = vunpack.c.l.b16 %v130
    %v432 = vunpack.c.h.b16 %v130
    %v433 = vunpack.c.l.b16 %v131
    %v434 = vunpack.c.h.b16 %v131
    %v435 = vunpack.c.l.b16 %v132
    %v436 = vunpack.c.h.b16 %v132
    %v437 = vunpack.c.l.b16 %v133
    %v438 = vunpack.c.h.b16 %v133
    %v439 = vunpack.c.l.b16 %v134
    %v440 = vunpack.c.h.b16 %v134
    %v441 = vunpack.c.l.b16 %v135
    %v442 = vunpack.c.h.b16 %v135
    %v443 = vunpack.c.l.b16 %v136
    %v444 = vunpack.c.h.b16 %v136
    %v445 = vunpack.c.l.b16 %v137
    %v446 = vunpack.c.h.b16 %v137
    %v447 = vunpack.c.l.b16 %v138
    %v448 = vunpack.c.h.b16 %v138
    %v449 = vunpack.c.l.b16 %v139
    %v450 = vunpack.c.h.b16 %v139
    %v451 = vunpack.c.l.b16 %v140
    %v452 = vunpack.c.h.b16 %v140
    %v453 = vunpack.c.l.b16 %v141
    %v454 = vunpack.c.h.b16 %v141
    %v455 = vunpack.c.l.b16 %v142
    %v456 = vunpack.c.h.b16 %v142
    %v457 = vunpack.c.l.b16 %v143
    %v458 = vunpack.c.h.b16 %v143
    %v459 = vunpack.c.l.b16 %v144
    %v460 = vunpack.c.h.b16 %v144
    %v461 = vunpack.c.l.b16 %v145
    %v462 = vunpack.c.h.b16 %v145
    %v463 = vunpack.c.l.b16 %v146
    %v464 = vunpack.c.h.b16 %v146
    %v465 = vunpack.c.l.b16 %v147
    %v466 = vunpack.c.h.b16 %v147
    %v467 = vunpack.c.l.b16 %v148
    %v468 = vunpack.c.h.b16 %v148
    %v469 = vunpack.c.l.b16 %v149
    %v470 = vunpack.c.h.b16 %v149
    %v471 = vunpack.c.l.b16 %v150
    %v472 = vunpack.c.h.b16 %v150
    %v473 = vunpack.c.l.b16 %v151
    %v474 = vunpack.c.h.b16 %v151
    %v475 = vunpack.c.l.b16 %v152
    %v476 = vunpack.c.h.b16 %v152
    %v477 = vunpack.c.l.b16 %v153
    %v478 = vunpack.c.h.b16 %v153
    %v479 = vunpack.c.l.b16 %v154
    %v480 = vunpack.c.h.b16 %v154
    %v481 = vunpack.c.l.b16 %v155
    %v482 = vunpack.c.h.b16 %v155
    %v483 = vunpack.c.l.b16 %v156
    %v484 = vunpack.c.h.b16 %v156
    %v485 = vunpack.c.l.b16 %v157
    %v486 = vunpack.c.h.b16 %v157
    %v487 = vunpack.c.l.b16 %v158
    %v488 = vunpack.c.h.b16 %v158
    %v489 = vpack.c.b16 %v295, %v293
    %v490 = vpack.c.b16 %v296, %v294
    %v491 = vpack.c.b16 %v299, %v297
    %v492 = vpack.c.b16 %v300, %v298
    %v493 = vpack.c.b16 %v303, %v301
    %v494 = vpack.c.b16 %v304, %v302
    %v495 = vpack.c.b16 %v307, %v305
    %v496 = vpack.c.b16 %v308, %v306
    %v497 = vpack.c.b16 %v311, %v309
    %v498 = vpack.c.b16 %v312, %v310
    %v499 = vpack.c.b16 %v315, %v313
    %v500 = vpack.c.b16 %v316, %v314
    %v501 = vpack.c.b16 %v319, %v317
    %v502 = vpack.c.b16 %v320, %v318
    %v503 = vpack.c.b16 %v323, %v321
    %v504 = vpack.c.b16 %v324, %v322
    %v505 = vpack.c.b16 %v327, %v325
    %v506 = vpack.c.b16 %v328, %v326
    %v507 = vpack.c.b16 %v331, %v329
    %v508 = vpack.c.b16 %v332, %v330
    %v509 = vpack.c.b16 %v335, %v333
    %v510 = vpack.c.b16 %v336, %v334
    %v511 = vpack.c.b16 %v339, %v337
    %v512 = vpack.c.b16 %v340, %v338
    %v513 = vpack.c.b16 %v343, %v341
    %v514 = vpack.c.b16 %v344, %v342
    %v515 = vpack.c.b16 %v347, %v345
    %v516 = vpack.c.b16 %v348, %v346
    %v517 = vpack.c.b16 %v351, %v349
    %v518 = vpack.c.b16 %v352, %v350
    %v519 = vpack.c.b16 %v355, %v353
    %v520 = vpack.c.b16 %v356, %v354
    %v521 = vpack.c.b16 %v359, %v357
    %v522 = vpack.c.b16 %v360, %v358
    %v523 = vpack.c.b16 %v363, %v361
    %v524 = vpack.c.b16 %v364, %v362
    %v525 = vpack.c.b16 %v367, %v365
    %v526 = vpack.c.b16 %v368, %v366
    %v527 = vpack.c.b16 %v371, %v369
    %v528 = vpack.c.b16 %v372, %v370
    %v529 = vpack.c.b16 %v375, %v373
    %v530 = vpack.c.b16 %v376, %v374
    %v531 = vpack.c.b16 %v379, %v377
    %v532 = vpack.c.b16 %v380, %v378
    %v533 = vpack.c.b16 %v383, %v381
    %v534 = vpack.c.b16 %v384, %v382
    %v535 = vpack.c.b16 %v387, %v385
    %v536 = vpack.c.b16 %v388, %v386
    %v537 = vpack.c.b16 %v391, %v389
    %v538 = vpack.c.b16 %v392, %v390
    %v539 = vpack.c.b16 %v395, %v393
    %v540 = vpack.c.b16 %v396, %v394
    %v541 = vpack.c.b16 %v399, %v397
    %v542 = vpack.c.b16 %v400, %v398
    %v543 = vpack.c.b16 %v403, %v401
    %v544 = vpack.c.b16 %v404, %v402
    %v545 = vpack.c.b16 %v407, %v405
    %v546 = vpack.c.b16 %v408, %v406
    %v547 = vpack.c.b16 %v411, %v409
    %v548 = vpack.c.b16 %v412, %v410
    %v549 = vpack.c.b16 %v415, %v413
    %v550 = vpack.c.b16 %v416, %v414
    %v551 = vpack.c.b16 %v419, %v417
    %v552 = vpack.c.b16 %v420, %v418
    %v553 = vpack.c.b16 %v423, %v421
    %v554 = vpack.c.b16 %v424, %v422
    %v555 = vpack.c.b16 %v427, %v425
    %v556 = vpack.c.b16 %v428, %v426
    %v557 = vpack.c.b16 %v431, %v429
    %v558 = vpack.c.b16 %v432, %v430
    %v559 = vpack.c.b16 %v435, %v433
    %v560 = vpack.c.b16 %v436, %v434
    %v561 = vpack.c.b16 %v439, %v437
    %v562 = vpack.c.b16 %v440, %v438
    %v563 = vpack.c.b16 %v443, %v441
    %v564 = vpack.c.b16 %v444, %v442
    %v565 = vpack.c.b16 %v447, %v445
    %v566 = vpack.c.b16 %v448, %v446
    %v567 = vpack.c.b16 %v451, %v449
    %v568 = vpack.c.b16 %v452, %v450
    %v569 = vpack.c.b16 %v455, %v453
    %v570 = vpack.c.b16 %v456, %v454
    %v571 = vpack.c.b16 %v459, %v457
    %v572 = vpack.c.b16 %v460, %v458
    %v573 = vpack.c.b16 %v463, %v461
    %v574 = vpack.c.b16 %v464, %v462
    %v575 = vpack.c.b16 %v467, %v465
    %v576 = vpack.c.b16 %v468, %v466
    %v577 = vpack.c.b16 %v471, %v469
    %v578 = vpack.c.b16 %v472, %v470
    %v579 = vpack.c.b16 %v475, %v473
    %v580 = vpack.c.b16 %v476, %v474
    %v581 = vpack.c.b16 %v479, %v477
    %v582 = vpack.c.b16 %v480, %v478
    %v583 = vpack.c.b16 %v483, %v481
    %v584 = vpack.c.b16 %v484, %v482
    %v585 = vpack.c.b16 %v487, %v485
    %v586 = vpack.c.b16 %v488, %v486
    %vm685 = vcmask 130048
    %v687 = vsel %vm685, %v188, 0
    %689 = vmatprep.subr.bf16.mxu0 %v504
    %690 = vmatpush1.bf16.msra.mxu0 %v503
    %691 = vmatprep.subr.bf16.mxu0 %v502
    %692 = vmatpush1.bf16.msra.mxu0 %v501
    %693 = vmatprep.subr.bf16.mxu0 %v500
    %694 = vmatpush1.bf16.msra.mxu0 %v499
    %695 = vmatprep.subr.bf16.mxu0 %v498
    %696 = vmatpush1.bf16.msra.mxu0 %v497
    %697 = vmatprep.subr.bf16.mxu0 %v496
    %698 = vmatpush1.bf16.msra.mxu0 %v495
    %699 = vmatprep.subr.bf16.mxu0 %v494
    %700 = vmatpush1.bf16.msra.mxu0 %v493
    %701 = vmatprep.subr.bf16.mxu0 %v492
    %702 = vmatpush1.bf16.msra.mxu0 %v491
    %703 = vmatprep.subr.bf16.mxu0 %v490
    %704 = vmatpush1.bf16.msra.mxu0 %v489
    %705 = vmatprep.subr.bf16.mxu0 %v520
    %706 = vmatpush2.bf16.msra.mxu0 %v519
    %707 = vmatprep.subr.bf16.mxu0 %v518
    %708 = vmatpush2.bf16.msra.mxu0 %v517
    %709 = vmatprep.subr.bf16.mxu0 %v516
    %710 = vmatpush2.bf16.msra.mxu0 %v515
    %711 = vmatprep.subr.bf16.mxu0 %v514
    %712 = vmatpush2.bf16.msra.mxu0 %v513
    %713 = vmatprep.subr.bf16.mxu0 %v512
    %714 = vmatpush2.bf16.msra.mxu0 %v511
    %715 = vmatprep.subr.bf16.mxu0 %v510
    %716 = vmatpush2.bf16.msra.mxu0 %v509
    %717 = vmatprep.subr.bf16.mxu0 %v508
    %718 = vmatpush2.bf16.msra.mxu0 %v507
    %719 = vmatprep.subr.bf16.mxu0 %v506
    %720 = vmatpush2.bf16.msra.mxu0 %v505
    %721 = vmatprep.mubr.bf16.mxu0 %v183
    %722 = vmatmul.mubr.bf16.gmra.mxu0 %v182
    %v723 = vpop.f32.mrf.mxu0
    %v724 = vadd.f32 %v164, %v723
    %v725 = vpop.f32.mrf.mxu0
    %v726 = vadd.f32 %v168, %v725
    %v727 = vpop.f32.mrf.mxu0
    %v728 = vpop.f32.mrf.mxu0
    %729 = vdwg.mxu0
    %730 = vmatprep.subr.bf16.mxu0 %v536
    %731 = vmatpush1.bf16.msra.mxu0 %v535
    %732 = vmatprep.subr.bf16.mxu0 %v534
    %733 = vmatpush1.bf16.msra.mxu0 %v533
    %734 = vmatprep.subr.bf16.mxu0 %v532
    %735 = vmatpush1.bf16.msra.mxu0 %v531
    %736 = vmatprep.subr.bf16.mxu0 %v530
    %737 = vmatpush1.bf16.msra.mxu0 %v529
    %738 = vmatprep.subr.bf16.mxu0 %v528
    %739 = vmatpush1.bf16.msra.mxu0 %v527
    %740 = vmatprep.subr.bf16.mxu0 %v526
    %741 = vmatpush1.bf16.msra.mxu0 %v525
    %742 = vmatprep.subr.bf16.mxu0 %v524
    %743 = vmatpush1.bf16.msra.mxu0 %v523
    %744 = vmatprep.subr.bf16.mxu0 %v522
    %745 = vmatpush1.bf16.msra.mxu0 %v521
    %746 = vmatprep.subr.bf16.mxu0 %v552
    %747 = vmatpush2.bf16.msra.mxu0 %v551
    %748 = vmatprep.subr.bf16.mxu0 %v550
    %749 = vmatpush2.bf16.msra.mxu0 %v549
    %750 = vmatprep.subr.bf16.mxu0 %v548
    %751 = vmatpush2.bf16.msra.mxu0 %v547
    %752 = vmatprep.subr.bf16.mxu0 %v546
    %753 = vmatpush2.bf16.msra.mxu0 %v545
    %754 = vmatprep.subr.bf16.mxu0 %v544
    %755 = vmatpush2.bf16.msra.mxu0 %v543
    %756 = vmatprep.subr.bf16.mxu0 %v542
    %757 = vmatpush2.bf16.msra.mxu0 %v541
    %758 = vmatprep.subr.bf16.mxu0 %v540
    %759 = vmatpush2.bf16.msra.mxu0 %v539
    %760 = vmatprep.subr.bf16.mxu0 %v538
    %761 = vmatpush2.bf16.msra.mxu0 %v537
    %762 = vmatprep.mubr.bf16.mxu0 %v185
    %763 = vmatmul.mubr.bf16.gmra.mxu0 %v184
    %v764 = vpop.f32.mrf.mxu0
    %v765 = vadd.f32 %v724, %v764
    %v766 = vpop.f32.mrf.mxu0
    %v767 = vadd.f32 %v726, %v766
    %v768 = vpop.f32.mrf.mxu0
    %v769 = vpop.f32.mrf.mxu0
    %770 = vdwg.mxu0
    %771 = vmatprep.subr.bf16.mxu0 %v568
    %772 = vmatpush1.bf16.msra.mxu0 %v567
    %773 = vmatprep.subr.bf16.mxu0 %v566
    %774 = vmatpush1.bf16.msra.mxu0 %v565
    %775 = vmatprep.subr.bf16.mxu0 %v564
    %776 = vmatpush1.bf16.msra.mxu0 %v563
    %777 = vmatprep.subr.bf16.mxu0 %v562
    %778 = vmatpush1.bf16.msra.mxu0 %v561
    %779 = vmatprep.subr.bf16.mxu0 %v560
    %780 = vmatpush1.bf16.msra.mxu0 %v559
    %781 = vmatprep.subr.bf16.mxu0 %v558
    %782 = vmatpush1.bf16.msra.mxu0 %v557
    %783 = vmatprep.subr.bf16.mxu0 %v556
    %784 = vmatpush1.bf16.msra.mxu0 %v555
    %785 = vmatprep.subr.bf16.mxu0 %v554
    %786 = vmatpush1.bf16.msra.mxu0 %v553
    %787 = vmatprep.subr.bf16.mxu0 %v584
    %788 = vmatpush2.bf16.msra.mxu0 %v583
    %789 = vmatprep.subr.bf16.mxu0 %v582
    %790 = vmatpush2.bf16.msra.mxu0 %v581
    %791 = vmatprep.subr.bf16.mxu0 %v580
    %792 = vmatpush2.bf16.msra.mxu0 %v579
    %793 = vmatprep.subr.bf16.mxu0 %v578
    %794 = vmatpush2.bf16.msra.mxu0 %v577
    %795 = vmatprep.subr.bf16.mxu0 %v576
    %796 = vmatpush2.bf16.msra.mxu0 %v575
    %797 = vmatprep.subr.bf16.mxu0 %v574
    %798 = vmatpush2.bf16.msra.mxu0 %v573
    %799 = vmatprep.subr.bf16.mxu0 %v572
    %800 = vmatpush2.bf16.msra.mxu0 %v571
    %801 = vmatprep.subr.bf16.mxu0 %v570
    %802 = vmatpush2.bf16.msra.mxu0 %v569
    %803 = vmatprep.mubr.bf16.mxu0 %v187
    %804 = vmatmul.mubr.bf16.gmra.mxu0 %v186
    %v805 = vpop.f32.mrf.mxu0
    %v806 = vadd.f32 %v765, %v805
    %v807 = vpop.f32.mrf.mxu0
    %v808 = vadd.f32 %v767, %v807
    %v809 = vpop.f32.mrf.mxu0
    %v810 = vpop.f32.mrf.mxu0
    %811 = vdwg.mxu0
    %812 = vmatprep.subr.bf16.mxu0 0
    %813 = vmatpush1.bf16.msra.mxu0 0
    %814 = vmatprep.subr.bf16.mxu0 0
    %815 = vmatpush1.bf16.msra.mxu0 0
    %816 = vmatprep.subr.bf16.mxu0 0
    %817 = vmatpush1.bf16.msra.mxu0 0
    %818 = vmatprep.subr.bf16.mxu0 0
    %819 = vmatpush1.bf16.msra.mxu0 0
    %820 = vmatprep.subr.bf16.mxu0 0
    %821 = vmatpush1.bf16.msra.mxu0 0
    %822 = vmatprep.subr.bf16.mxu0 0
    %823 = vmatpush1.bf16.msra.mxu0 0
    %824 = vmatprep.subr.bf16.mxu0 0
    %825 = vmatpush1.bf16.msra.mxu0 0
    %826 = vmatprep.subr.bf16.mxu0 %v586
    %827 = vmatpush1.bf16.msra.mxu0 %v585
    %828 = vmatprep.subr.bf16.mxu0 0
    %829 = vmatpush2.bf16.msra.mxu0 0
    %830 = vmatprep.subr.bf16.mxu0 0
    %831 = vmatpush2.bf16.msra.mxu0 0
    %832 = vmatprep.subr.bf16.mxu0 0
    %833 = vmatpush2.bf16.msra.mxu0 0
    %834 = vmatprep.subr.bf16.mxu0 0
    %835 = vmatpush2.bf16.msra.mxu0 0
    %836 = vmatprep.subr.bf16.mxu0 0
    %837 = vmatpush2.bf16.msra.mxu0 0
    %838 = vmatprep.subr.bf16.mxu0 0
    %839 = vmatpush2.bf16.msra.mxu0 0
    %840 = vmatprep.subr.bf16.mxu0 0
    %841 = vmatpush2.bf16.msra.mxu0 0
    %842 = vmatprep.subr.bf16.mxu0 0
    %843 = vmatpush2.bf16.msra.mxu0 0
    %844 = vmatprep.mubr.bf16.mxu0 0
    %845 = vmatmul.mubr.bf16.gmra.mxu0 %v687
    %v846 = vpop.f32.mrf.mxu0
    %v847 = vadd.f32 %v806, %v846
    %v848 = vpop.f32.mrf.mxu0
    %v849 = vadd.f32 %v808, %v848
    %v850 = vpop.f32.mrf.mxu0
    %v851 = vpop.f32.mrf.mxu0
    %852 = vdwg.mxu0
    %v853 = vmul.f32 %v847, 0.2
    %v854 = vmul.f32 %v849, 0.2
    %v855 = vmax.f32 %v847, %v853
    %v856 = vmax.f32 %v849, %v854
    %v857 = vpack.c.bf16 %v855, %v855
    %v858 = vpack.c.bf16 %v856, %v856
    %v859 = vld [vmem:[%s3] sm:$0xff]
    %v860 = vld [vmem:[%s3 + $0x8] sm:$0xff]
    %v861 = vld [vmem:[%s3 + $0x10] sm:$0xff]
    %v862 = vld [vmem:[%s3 + $0x18] sm:$0xff]
    %v863 = vld [vmem:[%s3 + $0x20] sm:$0xff]
    %v864 = vld [vmem:[%s3 + $0x28] sm:$0xff]
    %v865 = vld [vmem:[%s3 + $0x30] sm:$0xff]
    %v866 = vld [vmem:[%s3 + $0x38] sm:$0xff]
    %v867 = vld [vmem:[%s3 + $0x40] sm:$0xff]
    %v868 = vld [vmem:[%s3 + $0x48] sm:$0xff]
    %v869 = vld [vmem:[%s3 + $0x50] sm:$0xff]
    %v870 = vld [vmem:[%s3 + $0x58] sm:$0xff]
    %v871 = vld [vmem:[%s3 + $0x60] sm:$0xff]
    %v872 = vld [vmem:[%s3 + $0x68] sm:$0xff]
    %v873 = vld [vmem:[%s3 + $0x70] sm:$0xff]
    %v874 = vld [vmem:[%s3 + $0x78] sm:$0xff]
    %v875 = vld [vmem:[%s3 + $0x80] sm:$0xff]
    %v876 = vld [vmem:[%s3 + $0x88] sm:$0xff]
    %v877 = vld [vmem:[%s3 + $0x90] sm:$0xff]
    %v878 = vld [vmem:[%s3 + $0x98] sm:$0xff]
    %v879 = vld [vmem:[%s3 + $0xa0] sm:$0xff]
    %v880 = vld [vmem:[%s3 + $0xa8] sm:$0xff]
    %v881 = vld [vmem:[%s3 + $0xb0] sm:$0xff]
    %v882 = vld [vmem:[%s3 + $0xb8] sm:$0xff]
    %v883 = vld [vmem:[%s3 + $0xc0] sm:$0xff]
    %v884 = vld [vmem:[%s3 + $0xc8] sm:$0xff]
    %v885 = vld [vmem:[%s3 + $0xd0] sm:$0xff]
    %v886 = vld [vmem:[%s3 + $0xd8] sm:$0xff]
    %v887 = vld [vmem:[%s3 + $0xe0] sm:$0xff]
    %v888 = vld [vmem:[%s3 + $0xe8] sm:$0xff]
    %v889 = vld [vmem:[%s3 + $0xf0] sm:$0xff]
    %v890 = vld [vmem:[%s3 + $0xf8] sm:$0xff]
    %v891 = vld [vmem:[%s4] sm:$0x3]
    %v893 = vlaneseq
    %v894 = vshrl.u32 %v893, 7
    %v895 = vsub.s32 0, %v894
    %v896 = vrot.slane %v891, %v895
    %v897 = vlaneseq
    %v898 = vshrl.u32 %v897, 7
    %v899 = vsub.s32 1, %v898
    %v900 = vrot.slane %v891, %v899
    %v935 = vunpack.c.l.b16 %v859
    %v936 = vunpack.c.h.b16 %v859
    %v937 = vunpack.c.l.b16 %v860
    %v938 = vunpack.c.h.b16 %v860
    %v939 = vunpack.c.l.b16 %v861
    %v940 = vunpack.c.h.b16 %v861
    %v941 = vunpack.c.l.b16 %v862
    %v942 = vunpack.c.h.b16 %v862
    %v943 = vunpack.c.l.b16 %v863
    %v944 = vunpack.c.h.b16 %v863
    %v945 = vunpack.c.l.b16 %v864
    %v946 = vunpack.c.h.b16 %v864
    %v947 = vunpack.c.l.b16 %v865
    %v948 = vunpack.c.h.b16 %v865
    %v949 = vunpack.c.l.b16 %v866
    %v950 = vunpack.c.h.b16 %v866
    %v951 = vunpack.c.l.b16 %v867
    %v952 = vunpack.c.h.b16 %v867
    %v953 = vunpack.c.l.b16 %v868
    %v954 = vunpack.c.h.b16 %v868
    %v955 = vunpack.c.l.b16 %v869
    %v956 = vunpack.c.h.b16 %v869
    %v957 = vunpack.c.l.b16 %v870
    %v958 = vunpack.c.h.b16 %v870
    %v959 = vunpack.c.l.b16 %v871
    %v960 = vunpack.c.h.b16 %v871
    %v961 = vunpack.c.l.b16 %v872
    %v962 = vunpack.c.h.b16 %v872
    %v963 = vunpack.c.l.b16 %v873
    %v964 = vunpack.c.h.b16 %v873
    %v965 = vunpack.c.l.b16 %v874
    %v966 = vunpack.c.h.b16 %v874
    %v967 = vunpack.c.l.b16 %v875
    %v968 = vunpack.c.h.b16 %v875
    %v969 = vunpack.c.l.b16 %v876
    %v970 = vunpack.c.h.b16 %v876
    %v971 = vunpack.c.l.b16 %v877
    %v972 = vunpack.c.h.b16 %v877
    %v973 = vunpack.c.l.b16 %v878
    %v974 = vunpack.c.h.b16 %v878
    %v975 = vunpack.c.l.b16 %v879
    %v976 = vunpack.c.h.b16 %v879
    %v977 = vunpack.c.l.b16 %v880
    %v978 = vunpack.c.h.b16 %v880
    %v979 = vunpack.c.l.b16 %v881
    %v980 = vunpack.c.h.b16 %v881
    %v981 = vunpack.c.l.b16 %v882
    %v982 = vunpack.c.h.b16 %v882
    %v983 = vunpack.c.l.b16 %v883
    %v984 = vunpack.c.h.b16 %v883
    %v985 = vunpack.c.l.b16 %v884
    %v986 = vunpack.c.h.b16 %v884
    %v987 = vunpack.c.l.b16 %v885
    %v988 = vunpack.c.h.b16 %v885
    %v989 = vunpack.c.l.b16 %v886
    %v990 = vunpack.c.h.b16 %v886
    %v991 = vunpack.c.l.b16 %v887
    %v992 = vunpack.c.h.b16 %v887
    %v993 = vunpack.c.l.b16 %v888
    %v994 = vunpack.c.h.b16 %v888
    %v995 = vunpack.c.l.b16 %v889
    %v996 = vunpack.c.h.b16 %v889
    %v997 = vunpack.c.l.b16 %v890
    %v998 = vunpack.c.h.b16 %v890
    %v999 = vpack.c.b16 %v937, %v935
    %v1000 = vpack.c.b16 %v938, %v936
    %v1001 = vpack.c.b16 %v941, %v939
    %v1002 = vpack.c.b16 %v942, %v940
    %v1003 = vpack.c.b16 %v945, %v943
    %v1004 = vpack.c.b16 %v946, %v944
    %v1005 = vpack.c.b16 %v949, %v947
    %v1006 = vpack.c.b16 %v950, %v948
    %v1007 = vpack.c.b16 %v953, %v951
    %v1008 = vpack.c.b16 %v954, %v952
    %v1009 = vpack.c.b16 %v957, %v955
    %v1010 = vpack.c.b16 %v958, %v956
    %v1011 = vpack.c.b16 %v961, %v959
    %v1012 = vpack.c.b16 %v962, %v960
    %v1013 = vpack.c.b16 %v965, %v963
    %v1014 = vpack.c.b16 %v966, %v964
    %v1015 = vpack.c.b16 %v969, %v967
    %v1016 = vpack.c.b16 %v970, %v968
    %v1017 = vpack.c.b16 %v973, %v971
    %v1018 = vpack.c.b16 %v974, %v972
    %v1019 = vpack.c.b16 %v977, %v975
    %v1020 = vpack.c.b16 %v978, %v976
    %v1021 = vpack.c.b16 %v981, %v979
    %v1022 = vpack.c.b16 %v982, %v980
    %v1023 = vpack.c.b16 %v985, %v983
    %v1024 = vpack.c.b16 %v986, %v984
    %v1025 = vpack.c.b16 %v989, %v987
    %v1026 = vpack.c.b16 %v990, %v988
    %v1027 = vpack.c.b16 %v993, %v991
    %v1028 = vpack.c.b16 %v994, %v992
    %v1029 = vpack.c.b16 %v997, %v995
    %v1030 = vpack.c.b16 %v998, %v996
    %1063 = vmatprep.subr.bf16.mxu0 %v1014
    %1064 = vmatpush1.bf16.msra.mxu0 %v1013
    %1065 = vmatprep.subr.bf16.mxu0 %v1012
    %1066 = vmatpush1.bf16.msra.mxu0 %v1011
    %1067 = vmatprep.subr.bf16.mxu0 %v1010
    %1068 = vmatpush1.bf16.msra.mxu0 %v1009
    %1069 = vmatprep.subr.bf16.mxu0 %v1008
    %1070 = vmatpush1.bf16.msra.mxu0 %v1007
    %1071 = vmatprep.subr.bf16.mxu0 %v1006
    %1072 = vmatpush1.bf16.msra.mxu0 %v1005
    %1073 = vmatprep.subr.bf16.mxu0 %v1004
    %1074 = vmatpush1.bf16.msra.mxu0 %v1003
    %1075 = vmatprep.subr.bf16.mxu0 %v1002
    %1076 = vmatpush1.bf16.msra.mxu0 %v1001
    %1077 = vmatprep.subr.bf16.mxu0 %v1000
    %1078 = vmatpush1.bf16.msra.mxu0 %v999
    %1079 = vmatprep.subr.bf16.mxu0 %v1030
    %1080 = vmatpush2.bf16.msra.mxu0 %v1029
    %1081 = vmatprep.subr.bf16.mxu0 %v1028
    %1082 = vmatpush2.bf16.msra.mxu0 %v1027
    %1083 = vmatprep.subr.bf16.mxu0 %v1026
    %1084 = vmatpush2.bf16.msra.mxu0 %v1025
    %1085 = vmatprep.subr.bf16.mxu0 %v1024
    %1086 = vmatpush2.bf16.msra.mxu0 %v1023
    %1087 = vmatprep.subr.bf16.mxu0 %v1022
    %1088 = vmatpush2.bf16.msra.mxu0 %v1021
    %1089 = vmatprep.subr.bf16.mxu0 %v1020
    %1090 = vmatpush2.bf16.msra.mxu0 %v1019
    %1091 = vmatprep.subr.bf16.mxu0 %v1018
    %1092 = vmatpush2.bf16.msra.mxu0 %v1017
    %1093 = vmatprep.subr.bf16.mxu0 %v1016
    %1094 = vmatpush2.bf16.msra.mxu0 %v1015
    %1095 = vmatprep.mubr.bf16.mxu0 %v858
    %1096 = vmatmul.mubr.bf16.gmra.mxu0 %v857
    %v1097 = vpop.f32.mrf.mxu0
    %v1098 = vadd.f32 %v896, %v1097
    %v1099 = vpop.f32.mrf.mxu0
    %v1100 = vadd.f32 %v900, %v1099
    %v1101 = vpop.f32.mrf.mxu0
    %v1102 = vpop.f32.mrf.mxu0
    %1103 = vdwg.mxu0
    %v1104 = vmul.f32 %v1098, 0.2
    %v1105 = vmul.f32 %v1100, 0.2
    %v1106 = vmax.f32 %v1098, %v1104
    %v1107 = vmax.f32 %v1100, %v1105
    %v1108 = vpack.c.bf16 %v1106, %v1106
    %v1109 = vpack.c.bf16 %v1107, %v1107
    %v1110 = vld [vmem:[#allocation4] sm:$0xf]
    %v1111 = vld [vmem:[#allocation4 + $0x4] sm:$0xf]
    %v1112 = vld [vmem:[#allocation4 + $0x8] sm:$0xf]
    %v1113 = vld [vmem:[#allocation4 + $0xc] sm:$0xf]
    %v1114 = vld [vmem:[#allocation4 + $0x10] sm:$0xf]
    %v1115 = vld [vmem:[#allocation4 + $0x14] sm:$0xf]
    %v1116 = vld [vmem:[#allocation4 + $0x18] sm:$0xf]
    %v1117 = vld [vmem:[#allocation4 + $0x1c] sm:$0xf]
    %v1118 = vld [vmem:[#allocation4 + $0x20] sm:$0xf]
    %v1119 = vld [vmem:[#allocation4 + $0x24] sm:$0xf]
    %v1120 = vld [vmem:[#allocation4 + $0x28] sm:$0xf]
    %v1121 = vld [vmem:[#allocation4 + $0x2c] sm:$0xf]
    %v1122 = vld [vmem:[#allocation4 + $0x30] sm:$0xf]
    %v1123 = vld [vmem:[#allocation4 + $0x34] sm:$0xf]
    %v1124 = vld [vmem:[#allocation4 + $0x38] sm:$0xf]
    %v1125 = vld [vmem:[#allocation4 + $0x3c] sm:$0xf]
    %v1126 = vld [vmem:[#allocation4 + $0x40] sm:$0xf]
    %v1127 = vld [vmem:[#allocation4 + $0x44] sm:$0xf]
    %v1128 = vld [vmem:[#allocation4 + $0x48] sm:$0xf]
    %v1129 = vld [vmem:[#allocation4 + $0x4c] sm:$0xf]
    %v1130 = vld [vmem:[#allocation4 + $0x50] sm:$0xf]
    %v1131 = vld [vmem:[#allocation4 + $0x54] sm:$0xf]
    %v1132 = vld [vmem:[#allocation4 + $0x58] sm:$0xf]
    %v1133 = vld [vmem:[#allocation4 + $0x5c] sm:$0xf]
    %v1134 = vld [vmem:[#allocation4 + $0x60] sm:$0xf]
    %v1135 = vld [vmem:[#allocation4 + $0x64] sm:$0xf]
    %v1136 = vld [vmem:[#allocation4 + $0x68] sm:$0xf]
    %v1137 = vld [vmem:[#allocation4 + $0x6c] sm:$0xf]
    %v1138 = vld [vmem:[#allocation4 + $0x70] sm:$0xf]
    %v1139 = vld [vmem:[#allocation4 + $0x74] sm:$0xf]
    %v1140 = vld [vmem:[#allocation4 + $0x78] sm:$0xf]
    %v1141 = vld [vmem:[#allocation4 + $0x7c] sm:$0xf]
    %v1142 = vld [vmem:[%s6] sm:$0x1]
    %v1144 = vlaneseq
    %v1145 = vshrl.u32 %v1144, 7
    %v1146 = vsub.s32 0, %v1145
    %v1147 = vrot.slane %v1142, %v1146
    %v1181 = vunpack.c.l.b16 %v1110
    %v1182 = vunpack.c.l.b16 %v1111
    %v1183 = vunpack.c.l.b16 %v1112
    %v1184 = vunpack.c.l.b16 %v1113
    %v1185 = vunpack.c.l.b16 %v1114
    %v1186 = vunpack.c.l.b16 %v1115
    %v1187 = vunpack.c.l.b16 %v1116
    %v1188 = vunpack.c.l.b16 %v1117
    %v1189 = vunpack.c.l.b16 %v1118
    %v1190 = vunpack.c.l.b16 %v1119
    %v1191 = vunpack.c.l.b16 %v1120
    %v1192 = vunpack.c.l.b16 %v1121
    %v1193 = vunpack.c.l.b16 %v1122
    %v1194 = vunpack.c.l.b16 %v1123
    %v1195 = vunpack.c.l.b16 %v1124
    %v1196 = vunpack.c.l.b16 %v1125
    %v1197 = vunpack.c.l.b16 %v1126
    %v1198 = vunpack.c.l.b16 %v1127
    %v1199 = vunpack.c.l.b16 %v1128
    %v1200 = vunpack.c.l.b16 %v1129
    %v1201 = vunpack.c.l.b16 %v1130
    %v1202 = vunpack.c.l.b16 %v1131
    %v1203 = vunpack.c.l.b16 %v1132
    %v1204 = vunpack.c.l.b16 %v1133
    %v1205 = vunpack.c.l.b16 %v1134
    %v1206 = vunpack.c.l.b16 %v1135
    %v1207 = vunpack.c.l.b16 %v1136
    %v1208 = vunpack.c.l.b16 %v1137
    %v1209 = vunpack.c.l.b16 %v1138
    %v1210 = vunpack.c.l.b16 %v1139
    %v1211 = vunpack.c.l.b16 %v1140
    %v1212 = vunpack.c.l.b16 %v1141
    %v1213 = vpack.c.b16 %v1182, %v1181
    %v1214 = vpack.c.b16 %v1184, %v1183
    %v1215 = vpack.c.b16 %v1186, %v1185
    %v1216 = vpack.c.b16 %v1188, %v1187
    %v1217 = vpack.c.b16 %v1190, %v1189
    %v1218 = vpack.c.b16 %v1192, %v1191
    %v1219 = vpack.c.b16 %v1194, %v1193
    %v1220 = vpack.c.b16 %v1196, %v1195
    %v1221 = vpack.c.b16 %v1198, %v1197
    %v1222 = vpack.c.b16 %v1200, %v1199
    %v1223 = vpack.c.b16 %v1202, %v1201
    %v1224 = vpack.c.b16 %v1204, %v1203
    %v1225 = vpack.c.b16 %v1206, %v1205
    %v1226 = vpack.c.b16 %v1208, %v1207
    %v1227 = vpack.c.b16 %v1210, %v1209
    %v1228 = vpack.c.b16 %v1212, %v1211
    %1245 = vmatprep.subr.bf16.mxu0 0
    %1246 = vmatpush1.bf16.msra.mxu0 %v1220
    %1247 = vmatprep.subr.bf16.mxu0 0
    %1248 = vmatpush1.bf16.msra.mxu0 %v1219
    %1249 = vmatprep.subr.bf16.mxu0 0
    %1250 = vmatpush1.bf16.msra.mxu0 %v1218
    %1251 = vmatprep.subr.bf16.mxu0 0
    %1252 = vmatpush1.bf16.msra.mxu0 %v1217
    %1253 = vmatprep.subr.bf16.mxu0 0
    %1254 = vmatpush1.bf16.msra.mxu0 %v1216
    %1255 = vmatprep.subr.bf16.mxu0 0
    %1256 = vmatpush1.bf16.msra.mxu0 %v1215
    %1257 = vmatprep.subr.bf16.mxu0 0
    %1258 = vmatpush1.bf16.msra.mxu0 %v1214
    %1259 = vmatprep.subr.bf16.mxu0 0
    %1260 = vmatpush1.bf16.msra.mxu0 %v1213
    %1261 = vmatprep.subr.bf16.mxu0 0
    %1262 = vmatpush2.bf16.msra.mxu0 %v1228
    %1263 = vmatprep.subr.bf16.mxu0 0
    %1264 = vmatpush2.bf16.msra.mxu0 %v1227
    %1265 = vmatprep.subr.bf16.mxu0 0
    %1266 = vmatpush2.bf16.msra.mxu0 %v1226
    %1267 = vmatprep.subr.bf16.mxu0 0
    %1268 = vmatpush2.bf16.msra.mxu0 %v1225
    %1269 = vmatprep.subr.bf16.mxu0 0
    %1270 = vmatpush2.bf16.msra.mxu0 %v1224
    %1271 = vmatprep.subr.bf16.mxu0 0
    %1272 = vmatpush2.bf16.msra.mxu0 %v1223
    %1273 = vmatprep.subr.bf16.mxu0 0
    %1274 = vmatpush2.bf16.msra.mxu0 %v1222
    %1275 = vmatprep.subr.bf16.mxu0 0
    %1276 = vmatpush2.bf16.msra.mxu0 %v1221
    %1277 = vmatprep.mubr.bf16.mxu0 %v1109
    %1278 = vmatmul.mubr.bf16.gmra.mxu0 %v1108
    %v1279 = vpop.f32.mrf.mxu0
    %v1280 = vadd.f32 %v1147, %v1279
    %v1281 = vpop.f32.mrf.mxu0
    %v1282 = vpop.f32.mrf.mxu0
    %v1283 = vpop.f32.mrf.mxu0
    %1284 = vdwg.mxu0
    %1285 = vst [vmem:[%s7] sm:$0xff] %v1280
    %v1286 = vlaneseq
    %v1287 = vand.u32 %v1286, 127
    %vm1288 = vcmp.lt.s32.totalorder %v1287, 11
    %v1289 = vsel %vm1288, %v1280, -inf
    %1290 = vmax.xlane.f32.xlu0 %v1289
    %v1291 = vpop.xlane.xlu0 %1290
    %v1292 = vsub.f32 %v1289, %v1291
    %v1293 = vmul.f32 %v1292, 1.442695
    %v1294 = vpow.pop %v1293
    %v1295 = vsel %vm1288, %v1294, 0.0
    %1296 = vadd.xlane.f32.xlu0 %v1295
    %v1297 = vpop.xlane.xlu0 %1296
    %v1298 = vrcp.pop %v1297
    %v1299 = vmul.f32 %v1295, %v1298
    %1300 = vst [vmem:[%s8] sm:$0xff] %v1299
    // Predicated region
    $region38: #{mnist_discriminator.1} parent=1 // pred_check
      _
    $region39: #{mnist_discriminator.1} parent=1 // pred_check_branch
      %1302 = sbr.rel (0) target = $region41
    $region40: #{mnist_discriminator.1} parent=1 // pred_region
      _
    $region41: #{mnist_discriminator.1} parent=1 // pred_fallthru
      _
    // Predicated region
    $region42: #{mnist_discriminator.1} parent=1 // pred_check
      _
    $region43: #{mnist_discriminator.1} parent=1 // pred_check_branch
      %1304 = sbr.rel (0) target = $region45
    $region44: #{mnist_discriminator.1} parent=1 // pred_region
      _
    $region45: #{mnist_discriminator.1} parent=1 // pred_fallthru
      _
    // Predicated region
    $region46: #{mnist_discriminator.1} parent=1 // pred_check
      _
    $region47: #{mnist_discriminator.1} parent=1 // pred_check_branch
      %1306 = sbr.rel (0) target = $region49
    $region48: #{mnist_discriminator.1} parent=1 // pred_region
      _
    $region49: #{mnist_discriminator.1} parent=1 // pred_fallthru
      _
    // Predicated region
    $region50: #{mnist_discriminator.1} parent=1 // pred_check
      _
    $region51: #{mnist_discriminator.1} parent=1 // pred_check_branch
      %1308 = sbr.rel (0) target = $region53
    $region52: #{mnist_discriminator.1} parent=1 // pred_region
      _
    $region53: #{mnist_discriminator.1} parent=1 // pred_fallthru
      _
    %1309 = vsyncpa [#allocation3], 1
    %1310 = vsyncpa [#allocation5], 1

</llo_original>
